<compile_context>
chip_gen: v7x
topology: tpu7x:2x2x1
jax: 0.10.0
libtpu: 0.0.40
codegen_flags: <defaults>
</compile_context>

<pallas_src>
import jax
import jax.numpy as jnp
from jax.experimental import pallas as pl
from jax.experimental.pallas import tpu as pltpu


# Packed-parameter layout (flat f32 vector in SMEM), PyTorch (out, in) order.
# NOTE: the packed values are the *folded* weights (see _pack_params), not the
# raw nn.Linear parameters; offsets/shapes are identical to the raw layout.
#   A1 (4x6) -> [ 0:24)   c1 (4) -> [24:28)
#   A2 (2x4) -> [28:36)   c2 (2) -> [36:38)
#   A3 (1x2) -> [38:40)   c3 (1) -> [40:41)
_W1_OFF, _B1_OFF = 0, 24
_W2_OFF, _B2_OFF = 28, 36
_W3_OFF, _B3_OFF = 38, 40
_N_PARAMS = 41
_PACKED_LEN = 64            # pad packed params to a power of two

_LANES = 128                # samples per lane row
_TILE_S_MAX = 512           # sublane rows per grid step (512 * 128 = 65536 samples)


def titanic_kernel(p_ref, x_ref, o_ref):
    """One batch tile of the TitanicNet forward pass.

    p_ref : SMEM (64,)              folded packed weights + biases
    x_ref : VMEM (6, TILE_S, 128)   feature-major activations (dense slabs)
    o_ref : VMEM (TILE_S, 128)      sublane/lane-dense output
    """
    # Hoist all 41 SMEM scalar reads (and their vreg splats) to the top of the
    # body -- one per grid step, outside any compute.
    a1 = [[p_ref[_W1_OFF + o * 6 + i] for i in range(6)] for o in range(4)]
    c1 = [p_ref[_B1_OFF + o] for o in range(4)]
    a2 = [[p_ref[_W2_OFF + o * 4 + i] for i in range(4)] for o in range(2)]
    c2 = [p_ref[_B2_OFF + o] for o in range(2)]
    a3 = [[p_ref[_W3_OFF + i] for i in range(2)]]
    c3 = [p_ref[_B3_OFF]]

    rows = [x_ref[i] for i in range(6)]          # six dense (TILE_S, 128) slabs

    def affine_tanh(rows_in, w, c):
        # Tiny contraction (<= 6 wide): VPU scalar-broadcast FMAs + EUP tanh.
        outs = []
        for o in range(len(w)):
            acc = rows_in[0] * w[o][0]
            for i in range(1, len(rows_in)):
                acc = acc + rows_in[i] * w[o][i]
            outs.append(jnp.tanh(acc + c[o]))    # EUP slot (otherwise idle)
        return outs

    t1 = affine_tanh(rows, a1, c1)               # Linear(6,4) + sigmoid (folded)
    t2 = affine_tanh(t1, a2, c2)                 # Linear(4,2) + sigmoid (folded)
    t3 = affine_tanh(t2, a3, c3)                 # Linear(2,1) + sigmoid (folded)
    o_ref[...] = 0.5 * t3[0] + 0.5               # undo tanh<->sigmoid change of var.


def _round_up(n, m):
    return (n + m - 1) // m * m


def _choose_tile_s(n_rows):
    """Sublane rows per grid step."""
    if n_rows <= 8:
        return 8
    # >= 2 grid steps when there is enough work (v7x megacore sharding), capped
    # so double-buffered VMEM stays small on every generation (v5e 16 MiB scoped).
    return min(_TILE_S_MAX, _round_up(-(-n_rows // 2), 8))


def _pack_params(params):
    """Pack + fold all parameters into one flat f32 vector (SMEM resident).

    Uses sigmoid(z) = 0.5*tanh(z/2) + 0.5 and folds every 0.5 scale / +0.5 shift
    into the 41 weight/bias scalars, so the kernel computes
        t1 = tanh(A1 x  + c1);  t2 = tanh(A2 t1 + c2);  t3 = tanh(A3 t2 + c3)
        y  = 0.5*t3 + 0.5
    which equals the original sigmoid MLP up to float rounding.
    """
    w1, b1, w2, b2, w3, b3 = [jnp.asarray(p, jnp.float32) for p in params]
    a1 = 0.5 * w1
    c1 = 0.5 * b1
    a2 = 0.25 * w2
    c2 = 0.25 * jnp.sum(w2, axis=1) + 0.5 * b2
    a3 = 0.25 * w3
    c3 = 0.25 * jnp.sum(w3, axis=1) + 0.5 * b3
    p = jnp.concatenate([a1.ravel(), c1.ravel(), a2.ravel(), c2.ravel(),
                         a3.ravel(), c3.ravel()])
    return jnp.pad(p, (0, _PACKED_LEN - _N_PARAMS))


def titanic_forward_feature_major(xt, packed_params, *, tile_s=None):
    """Forward pass on feature-major input (no relayout pass).

    xt            : (6, S, 128) f32, S a multiple of 8; sample n lives at
                    [:, n // 128, n % 128].
    packed_params : (64,) f32 from _pack_params.
    returns       : (S, 128) f32 sigmoid outputs in the same sample order.
    """
    nf, S, L = xt.shape
    assert nf == 6 and L == _LANES and S % 8 == 0
    if tile_s is None:
        tile_s = _choose_tile_s(S)
    assert S % tile_s == 0
    return pl.pallas_call(
        titanic_kernel,
        out_shape=jax.ShapeDtypeStruct((S, _LANES), jnp.float32),
        grid=(S // tile_s,),
        in_specs=[
            pl.BlockSpec(memory_space=pltpu.MemorySpace.SMEM),        # packed params
            pl.BlockSpec((6, tile_s, _LANES), lambda b: (0, b, 0)),   # activations
        ],
        out_specs=pl.BlockSpec((tile_s, _LANES), lambda b: (b, 0)),
        compiler_params=pltpu.CompilerParams(
            dimension_semantics=("parallel",)),    # megacore sharding on v7x
    )(packed_params, xt)


@jax.jit
def titanic_net(x, params):
    """TitanicNet forward with PyTorch layout. x: (B, 6) -> (B, 1) f32.

    This wrapper relayouts (B, 6) -> feature-major (6, S, 128) in one extra HBM
    pass; feed titanic_forward_feature_major directly to avoid it.
    """
    B = x.shape[0]
    p = _pack_params(params)

    n_rows = -(-max(B, 1) // _LANES)
    tile_s = _choose_tile_s(n_rows)
    s_pad = _round_up(n_rows, tile_s)
    b_pad = s_pad * _LANES

    xf = x.astype(jnp.float32)
    if b_pad != B:
        xf = jnp.pad(xf, ((0, b_pad - B), (0, 0)))
    xt = xf.reshape(s_pad, _LANES, 6).transpose(2, 0, 1)     # (6, S, 128)

    out = titanic_forward_feature_major(xt, p, tile_s=tile_s)
    return out.reshape(b_pad)[:B][:, None]                   # PyTorch (B, 1) layout


def init_params(key):
    """PyTorch nn.Linear-style params: W is (out_features, in_features), b is (out,)."""
    ks = jax.random.split(key, 6)

    def linear(kw, kb, fan_in, fan_out):
        bound = 1.0 / jnp.sqrt(fan_in)
        w = jax.random.uniform(kw, (fan_out, fan_in), jnp.float32, -bound, bound)
        b = jax.random.uniform(kb, (fan_out,), jnp.float32, -bound, bound)
        return w, b

    w1, b1 = linear(ks[0], ks[1], 6, 4)
    w2, b2 = linear(ks[2], ks[3], 4, 2)
    w3, b3 = linear(ks[4], ks[5], 2, 1)
    return w1, b1, w2, b2, w3, b3


def _reference(x, params):
    # Pure-JAX reference with identical (PyTorch) semantics: y = sigmoid(x W^T + b).
    w1, b1, w2, b2, w3, b3 = params
    h = jax.nn.sigmoid(x @ w1.T + b1)
    h = jax.nn.sigmoid(h @ w2.T + b2)
    return jax.nn.sigmoid(h @ w3.T + b3)


if __name__ == "__main__":
    key = jax.random.PRNGKey(0)
    kx1, kx2, kp = jax.random.split(key, 3)
    params = init_params(kp)

    ok = True

    # Small batch (single grid step, heavily padded tile).
    x_small = jax.random.normal(kx1, (8, 6), dtype=jnp.float32)
    out_small = jax.block_until_ready(titanic_net(x_small, params))
    ok &= out_small.shape == (8, 1)
    ok &= bool(jnp.allclose(out_small, _reference(x_small, params), atol=1e-5))

    # Larger, non-multiple-of-128 batch: exercises padding and a >=2-step grid
    # (pipelining + megacore path).
    x_big = jax.random.normal(kx2, (4500, 6), dtype=jnp.float32)
    out_big = jax.block_until_ready(titanic_net(x_big, params))
    ok &= out_big.shape == (4500, 1)
    ok &= bool(jnp.allclose(out_big, _reference(x_big, params), atol=1e-5))

    assert ok, "mismatch vs pure-JAX reference"
    print("KERNEL_OK")
</pallas_src>

<mosaic_0001>
module attributes {stable_mosaic.version = 11 : i64} {
  func.func @titanic_kernel(%arg0: i32, %arg1: memref<64xf32, #tpu.memory_space<smem>>, %arg2: memref<6x8x128xf32, #tpu.memory_space<vmem>>, %arg3: memref<8x128xf32, #tpu.memory_space<vmem>>) attributes {dimension_semantics = [#tpu.dimension_semantics<parallel>], iteration_bounds = array<i64: 1>, scalar_prefetch = 0 : i64, scratch_operands = 0 : i64, tpu.core_type = #tpu.core_type<tc>, window_params = [{transform_indices = @transform_0, window_bounds = array<i64: 64>}, {transform_indices = @transform_1, window_bounds = array<i64: 6, 8, 128>}, {transform_indices = @transform_2, window_bounds = array<i64: 8, 128>}]} {
    %c0 = arith.constant 0 : index
    %0 = memref.load %arg1[%c0] : memref<64xf32, #tpu.memory_space<smem>>
    %c1 = arith.constant 1 : index
    %1 = memref.load %arg1[%c1] : memref<64xf32, #tpu.memory_space<smem>>
    %c2 = arith.constant 2 : index
    %2 = memref.load %arg1[%c2] : memref<64xf32, #tpu.memory_space<smem>>
    %c3 = arith.constant 3 : index
    %3 = memref.load %arg1[%c3] : memref<64xf32, #tpu.memory_space<smem>>
    %c4 = arith.constant 4 : index
    %4 = memref.load %arg1[%c4] : memref<64xf32, #tpu.memory_space<smem>>
    %c5 = arith.constant 5 : index
    %5 = memref.load %arg1[%c5] : memref<64xf32, #tpu.memory_space<smem>>
    %c6 = arith.constant 6 : index
    %6 = memref.load %arg1[%c6] : memref<64xf32, #tpu.memory_space<smem>>
    %c7 = arith.constant 7 : index
    %7 = memref.load %arg1[%c7] : memref<64xf32, #tpu.memory_space<smem>>
    %c8 = arith.constant 8 : index
    %8 = memref.load %arg1[%c8] : memref<64xf32, #tpu.memory_space<smem>>
    %c9 = arith.constant 9 : index
    %9 = memref.load %arg1[%c9] : memref<64xf32, #tpu.memory_space<smem>>
    %c10 = arith.constant 10 : index
    %10 = memref.load %arg1[%c10] : memref<64xf32, #tpu.memory_space<smem>>
    %c11 = arith.constant 11 : index
    %11 = memref.load %arg1[%c11] : memref<64xf32, #tpu.memory_space<smem>>
    %c12 = arith.constant 12 : index
    %12 = memref.load %arg1[%c12] : memref<64xf32, #tpu.memory_space<smem>>
    %c13 = arith.constant 13 : index
    %13 = memref.load %arg1[%c13] : memref<64xf32, #tpu.memory_space<smem>>
    %c14 = arith.constant 14 : index
    %14 = memref.load %arg1[%c14] : memref<64xf32, #tpu.memory_space<smem>>
    %c15 = arith.constant 15 : index
    %15 = memref.load %arg1[%c15] : memref<64xf32, #tpu.memory_space<smem>>
    %c16 = arith.constant 16 : index
    %16 = memref.load %arg1[%c16] : memref<64xf32, #tpu.memory_space<smem>>
    %c17 = arith.constant 17 : index
    %17 = memref.load %arg1[%c17] : memref<64xf32, #tpu.memory_space<smem>>
    %c18 = arith.constant 18 : index
    %18 = memref.load %arg1[%c18] : memref<64xf32, #tpu.memory_space<smem>>
    %c19 = arith.constant 19 : index
    %19 = memref.load %arg1[%c19] : memref<64xf32, #tpu.memory_space<smem>>
    %c20 = arith.constant 20 : index
    %20 = memref.load %arg1[%c20] : memref<64xf32, #tpu.memory_space<smem>>
    %c21 = arith.constant 21 : index
    %21 = memref.load %arg1[%c21] : memref<64xf32, #tpu.memory_space<smem>>
    %c22 = arith.constant 22 : index
    %22 = memref.load %arg1[%c22] : memref<64xf32, #tpu.memory_space<smem>>
    %c23 = arith.constant 23 : index
    %23 = memref.load %arg1[%c23] : memref<64xf32, #tpu.memory_space<smem>>
    %c24 = arith.constant 24 : index
    %24 = memref.load %arg1[%c24] : memref<64xf32, #tpu.memory_space<smem>>
    %c25 = arith.constant 25 : index
    %25 = memref.load %arg1[%c25] : memref<64xf32, #tpu.memory_space<smem>>
    %c26 = arith.constant 26 : index
    %26 = memref.load %arg1[%c26] : memref<64xf32, #tpu.memory_space<smem>>
    %c27 = arith.constant 27 : index
    %27 = memref.load %arg1[%c27] : memref<64xf32, #tpu.memory_space<smem>>
    %c28 = arith.constant 28 : index
    %28 = memref.load %arg1[%c28] : memref<64xf32, #tpu.memory_space<smem>>
    %c29 = arith.constant 29 : index
    %29 = memref.load %arg1[%c29] : memref<64xf32, #tpu.memory_space<smem>>
    %c30 = arith.constant 30 : index
    %30 = memref.load %arg1[%c30] : memref<64xf32, #tpu.memory_space<smem>>
    %c31 = arith.constant 31 : index
    %31 = memref.load %arg1[%c31] : memref<64xf32, #tpu.memory_space<smem>>
    %c32 = arith.constant 32 : index
    %32 = memref.load %arg1[%c32] : memref<64xf32, #tpu.memory_space<smem>>
    %c33 = arith.constant 33 : index
    %33 = memref.load %arg1[%c33] : memref<64xf32, #tpu.memory_space<smem>>
    %c34 = arith.constant 34 : index
    %34 = memref.load %arg1[%c34] : memref<64xf32, #tpu.memory_space<smem>>
    %c35 = arith.constant 35 : index
    %35 = memref.load %arg1[%c35] : memref<64xf32, #tpu.memory_space<smem>>
    %c36 = arith.constant 36 : index
    %36 = memref.load %arg1[%c36] : memref<64xf32, #tpu.memory_space<smem>>
    %c37 = arith.constant 37 : index
    %37 = memref.load %arg1[%c37] : memref<64xf32, #tpu.memory_space<smem>>
    %c38 = arith.constant 38 : index
    %38 = memref.load %arg1[%c38] : memref<64xf32, #tpu.memory_space<smem>>
    %c39 = arith.constant 39 : index
    %39 = memref.load %arg1[%c39] : memref<64xf32, #tpu.memory_space<smem>>
    %c40 = arith.constant 40 : index
    %40 = memref.load %arg1[%c40] : memref<64xf32, #tpu.memory_space<smem>>
    %c0_0 = arith.constant 0 : index
    %c0_1 = arith.constant 0 : index
    %c0_2 = arith.constant 0 : index
    %41 = vector.load %arg2[%c0_0, %c0_1, %c0_2] : memref<6x8x128xf32, #tpu.memory_space<vmem>>, vector<1x8x128xf32>
    %42 = vector.shape_cast %41 : vector<1x8x128xf32> to vector<8x128xf32>
    %c1_3 = arith.constant 1 : index
    %c0_4 = arith.constant 0 : index
    %c0_5 = arith.constant 0 : index
    %43 = vector.load %arg2[%c1_3, %c0_4, %c0_5] : memref<6x8x128xf32, #tpu.memory_space<vmem>>, vector<1x8x128xf32>
    %44 = vector.shape_cast %43 : vector<1x8x128xf32> to vector<8x128xf32>
    %c2_6 = arith.constant 2 : index
    %c0_7 = arith.constant 0 : index
    %c0_8 = arith.constant 0 : index
    %45 = vector.load %arg2[%c2_6, %c0_7, %c0_8] : memref<6x8x128xf32, #tpu.memory_space<vmem>>, vector<1x8x128xf32>
    %46 = vector.shape_cast %45 : vector<1x8x128xf32> to vector<8x128xf32>
    %c3_9 = arith.constant 3 : index
    %c0_10 = arith.constant 0 : index
    %c0_11 = arith.constant 0 : index
    %47 = vector.load %arg2[%c3_9, %c0_10, %c0_11] : memref<6x8x128xf32, #tpu.memory_space<vmem>>, vector<1x8x128xf32>
    %48 = vector.shape_cast %47 : vector<1x8x128xf32> to vector<8x128xf32>
    %c4_12 = arith.constant 4 : index
    %c0_13 = arith.constant 0 : index
    %c0_14 = arith.constant 0 : index
    %49 = vector.load %arg2[%c4_12, %c0_13, %c0_14] : memref<6x8x128xf32, #tpu.memory_space<vmem>>, vector<1x8x128xf32>
    %50 = vector.shape_cast %49 : vector<1x8x128xf32> to vector<8x128xf32>
    %c5_15 = arith.constant 5 : index
    %c0_16 = arith.constant 0 : index
    %c0_17 = arith.constant 0 : index
    %51 = vector.load %arg2[%c5_15, %c0_16, %c0_17] : memref<6x8x128xf32, #tpu.memory_space<vmem>>, vector<1x8x128xf32>
    %52 = vector.shape_cast %51 : vector<1x8x128xf32> to vector<8x128xf32>
    %53 = vector.broadcast %0 : f32 to vector<8x128xf32>
    %54 = arith.mulf %42, %53 : vector<8x128xf32>
    %55 = vector.broadcast %1 : f32 to vector<8x128xf32>
    %56 = arith.mulf %44, %55 : vector<8x128xf32>
    %57 = arith.addf %54, %56 : vector<8x128xf32>
    %58 = vector.broadcast %2 : f32 to vector<8x128xf32>
    %59 = arith.mulf %46, %58 : vector<8x128xf32>
    %60 = arith.addf %57, %59 : vector<8x128xf32>
    %61 = vector.broadcast %3 : f32 to vector<8x128xf32>
    %62 = arith.mulf %48, %61 : vector<8x128xf32>
    %63 = arith.addf %60, %62 : vector<8x128xf32>
    %64 = vector.broadcast %4 : f32 to vector<8x128xf32>
    %65 = arith.mulf %50, %64 : vector<8x128xf32>
    %66 = arith.addf %63, %65 : vector<8x128xf32>
    %67 = vector.broadcast %5 : f32 to vector<8x128xf32>
    %68 = arith.mulf %52, %67 : vector<8x128xf32>
    %69 = arith.addf %66, %68 : vector<8x128xf32>
    %70 = vector.broadcast %24 : f32 to vector<8x128xf32>
    %71 = arith.addf %69, %70 : vector<8x128xf32>
    %72 = math.tanh %71 : vector<8x128xf32>
    %73 = vector.broadcast %6 : f32 to vector<8x128xf32>
    %74 = arith.mulf %42, %73 : vector<8x128xf32>
    %75 = vector.broadcast %7 : f32 to vector<8x128xf32>
    %76 = arith.mulf %44, %75 : vector<8x128xf32>
    %77 = arith.addf %74, %76 : vector<8x128xf32>
    %78 = vector.broadcast %8 : f32 to vector<8x128xf32>
    %79 = arith.mulf %46, %78 : vector<8x128xf32>
    %80 = arith.addf %77, %79 : vector<8x128xf32>
    %81 = vector.broadcast %9 : f32 to vector<8x128xf32>
    %82 = arith.mulf %48, %81 : vector<8x128xf32>
    %83 = arith.addf %80, %82 : vector<8x128xf32>
    %84 = vector.broadcast %10 : f32 to vector<8x128xf32>
    %85 = arith.mulf %50, %84 : vector<8x128xf32>
    %86 = arith.addf %83, %85 : vector<8x128xf32>
    %87 = vector.broadcast %11 : f32 to vector<8x128xf32>
    %88 = arith.mulf %52, %87 : vector<8x128xf32>
    %89 = arith.addf %86, %88 : vector<8x128xf32>
    %90 = vector.broadcast %25 : f32 to vector<8x128xf32>
    %91 = arith.addf %89, %90 : vector<8x128xf32>
    %92 = math.tanh %91 : vector<8x128xf32>
    %93 = vector.broadcast %12 : f32 to vector<8x128xf32>
    %94 = arith.mulf %42, %93 : vector<8x128xf32>
    %95 = vector.broadcast %13 : f32 to vector<8x128xf32>
    %96 = arith.mulf %44, %95 : vector<8x128xf32>
    %97 = arith.addf %94, %96 : vector<8x128xf32>
    %98 = vector.broadcast %14 : f32 to vector<8x128xf32>
    %99 = arith.mulf %46, %98 : vector<8x128xf32>
    %100 = arith.addf %97, %99 : vector<8x128xf32>
    %101 = vector.broadcast %15 : f32 to vector<8x128xf32>
    %102 = arith.mulf %48, %101 : vector<8x128xf32>
    %103 = arith.addf %100, %102 : vector<8x128xf32>
    %104 = vector.broadcast %16 : f32 to vector<8x128xf32>
    %105 = arith.mulf %50, %104 : vector<8x128xf32>
    %106 = arith.addf %103, %105 : vector<8x128xf32>
    %107 = vector.broadcast %17 : f32 to vector<8x128xf32>
    %108 = arith.mulf %52, %107 : vector<8x128xf32>
    %109 = arith.addf %106, %108 : vector<8x128xf32>
    %110 = vector.broadcast %26 : f32 to vector<8x128xf32>
    %111 = arith.addf %109, %110 : vector<8x128xf32>
    %112 = math.tanh %111 : vector<8x128xf32>
    %113 = vector.broadcast %18 : f32 to vector<8x128xf32>
    %114 = arith.mulf %42, %113 : vector<8x128xf32>
    %115 = vector.broadcast %19 : f32 to vector<8x128xf32>
    %116 = arith.mulf %44, %115 : vector<8x128xf32>
    %117 = arith.addf %114, %116 : vector<8x128xf32>
    %118 = vector.broadcast %20 : f32 to vector<8x128xf32>
    %119 = arith.mulf %46, %118 : vector<8x128xf32>
    %120 = arith.addf %117, %119 : vector<8x128xf32>
    %121 = vector.broadcast %21 : f32 to vector<8x128xf32>
    %122 = arith.mulf %48, %121 : vector<8x128xf32>
    %123 = arith.addf %120, %122 : vector<8x128xf32>
    %124 = vector.broadcast %22 : f32 to vector<8x128xf32>
    %125 = arith.mulf %50, %124 : vector<8x128xf32>
    %126 = arith.addf %123, %125 : vector<8x128xf32>
    %127 = vector.broadcast %23 : f32 to vector<8x128xf32>
    %128 = arith.mulf %52, %127 : vector<8x128xf32>
    %129 = arith.addf %126, %128 : vector<8x128xf32>
    %130 = vector.broadcast %27 : f32 to vector<8x128xf32>
    %131 = arith.addf %129, %130 : vector<8x128xf32>
    %132 = math.tanh %131 : vector<8x128xf32>
    %133 = vector.broadcast %28 : f32 to vector<8x128xf32>
    %134 = arith.mulf %72, %133 : vector<8x128xf32>
    %135 = vector.broadcast %29 : f32 to vector<8x128xf32>
    %136 = arith.mulf %92, %135 : vector<8x128xf32>
    %137 = arith.addf %134, %136 : vector<8x128xf32>
    %138 = vector.broadcast %30 : f32 to vector<8x128xf32>
    %139 = arith.mulf %112, %138 : vector<8x128xf32>
    %140 = arith.addf %137, %139 : vector<8x128xf32>
    %141 = vector.broadcast %31 : f32 to vector<8x128xf32>
    %142 = arith.mulf %132, %141 : vector<8x128xf32>
    %143 = arith.addf %140, %142 : vector<8x128xf32>
    %144 = vector.broadcast %36 : f32 to vector<8x128xf32>
    %145 = arith.addf %143, %144 : vector<8x128xf32>
    %146 = math.tanh %145 : vector<8x128xf32>
    %147 = vector.broadcast %32 : f32 to vector<8x128xf32>
    %148 = arith.mulf %72, %147 : vector<8x128xf32>
    %149 = vector.broadcast %33 : f32 to vector<8x128xf32>
    %150 = arith.mulf %92, %149 : vector<8x128xf32>
    %151 = arith.addf %148, %150 : vector<8x128xf32>
    %152 = vector.broadcast %34 : f32 to vector<8x128xf32>
    %153 = arith.mulf %112, %152 : vector<8x128xf32>
    %154 = arith.addf %151, %153 : vector<8x128xf32>
    %155 = vector.broadcast %35 : f32 to vector<8x128xf32>
    %156 = arith.mulf %132, %155 : vector<8x128xf32>
    %157 = arith.addf %154, %156 : vector<8x128xf32>
    %158 = vector.broadcast %37 : f32 to vector<8x128xf32>
    %159 = arith.addf %157, %158 : vector<8x128xf32>
    %160 = math.tanh %159 : vector<8x128xf32>
    %161 = vector.broadcast %38 : f32 to vector<8x128xf32>
    %162 = arith.mulf %146, %161 : vector<8x128xf32>
    %163 = vector.broadcast %39 : f32 to vector<8x128xf32>
    %164 = arith.mulf %160, %163 : vector<8x128xf32>
    %165 = arith.addf %162, %164 : vector<8x128xf32>
    %166 = vector.broadcast %40 : f32 to vector<8x128xf32>
    %167 = arith.addf %165, %166 : vector<8x128xf32>
    %168 = math.tanh %167 : vector<8x128xf32>
    %cst = arith.constant 5.000000e-01 : f32
    %169 = vector.broadcast %cst : f32 to vector<8x128xf32>
    %170 = arith.mulf %169, %168 : vector<8x128xf32>
    %cst_18 = arith.constant 5.000000e-01 : f32
    %171 = vector.broadcast %cst_18 : f32 to vector<8x128xf32>
    %172 = arith.addf %170, %171 : vector<8x128xf32>
    %c0_19 = arith.constant 0 : index
    %c0_20 = arith.constant 0 : index
    %173 = vector.load %arg3[%c0_19, %c0_20] : memref<8x128xf32, #tpu.memory_space<vmem>>, vector<8x128xf32>
    tpu.vector_store %arg3[%c0_19, %c0_20], %172 {strides = array<i32>} : memref<8x128xf32, #tpu.memory_space<vmem>>, vector<8x128xf32>,
    return
  }
  func.func @transform_0(%arg0: i32) -> i32 {
    %c0_i32 = arith.constant 0 : i32
    %c0_i32_0 = arith.constant 0 : i32
    return %c0_i32 : i32
  }
  func.func @transform_1(%arg0: i32) -> (i32, i32, i32) {
    %c0_i32 = arith.constant 0 : i32
    %c0_i32_0 = arith.constant 0 : i32
    %c0_i32_1 = arith.constant 0 : i32
    return %c0_i32, %arg0, %c0_i32_0 : i32, i32, i32
  }
  func.func @transform_2(%arg0: i32) -> (i32, i32) {
    %c0_i32 = arith.constant 0 : i32
    %c0_i32_0 = arith.constant 0 : i32
    return %arg0, %c0_i32 : i32, i32
  }
}

</mosaic_0001>

<llo_original>
// kernel: titanic_net.1
$region0: #{titanic_net.1}
  #allocation0 [shape = 'u32[]', space=smem, size = 0x4, offset = 0x4, fixed_abs, tag = 'smem constant byte address 0x4 - core index']
  #allocation1 [shape = 'u32[144,128]{1,0:T(1,128)}', space=vmem, size = 0x12000, scoped, tag = 'internal scratch']
  %s0 = inlined_call_operand.vmem [shape: f32[64], index: 0, kind: input, shape index: {}]
  %s1 = inlined_call_operand.vmem [shape: f32[6,8,128], index: 1, kind: input, shape index: {}]
  %s2 = inlined_call_operand.vmem [shape: f32[8,128], index: 2, kind: output, shape index: {}]
  %s3 = sld [smem:[#allocation0]]
  $region22: #{titanic_net.1} parent=0
    _
  %s5 = ssub.s32 1, %s3
  %s6 = scalar_select 0, %s5, %s3
  $region1: #{titanic_net.1} parent=0
    #allocation2 [shape = 'u8[512]{0}', space=smem, size = 0x200, scoped, tag = 'input window, operand 0, single buffered']
    #allocation3 [shape = 's32[1]{0}', space=sflag, size = 0x4, scoped, tag = 'scoped memory for titanic_net.1']
    %7 = vsyncpa [#allocation3], 0
    // Predicated region
    $region2: #{titanic_net.1} parent=1 // pred_check
      _
    $region3: #{titanic_net.1} parent=1 // pred_check_branch
      %9 = sbr.rel (0) target = $region5
    $region4: #{titanic_net.1} parent=1 // pred_region
      %s11 = ssub.s32 16, 16
      %12 = vsyncadd [#allocation3], %s11
      %s14 = sshll.u32 %s0, 4
      %s15 = int_to_ptr.vmem [resolvable:$true] %s14
      %17 = dma.vmem_to_smem %s15, 16, [#allocation2], [#allocation3]
    $region5: #{titanic_net.1} parent=1 // pred_fallthru
      _
    // Predicated region
    $region6: #{titanic_net.1} parent=1 // pred_check
      _
    $region7: #{titanic_net.1} parent=1 // pred_check_branch
      %19 = sbr.rel (0) target = $region9
    $region8: #{titanic_net.1} parent=1 // pred_region
      _
    $region9: #{titanic_net.1} parent=1 // pred_fallthru
      _
    // Predicated region
    $region10: #{titanic_net.1} parent=1 // pred_check
      _
    $region11: #{titanic_net.1} parent=1 // pred_check_branch
      %21 = sbr.rel (0) target = $region13
    $region12: #{titanic_net.1} parent=1 // pred_region
      %22 = dma.done [#allocation3], 16
    $region13: #{titanic_net.1} parent=1 // pred_fallthru
      _
    %23 = sfence
    %s24 = sld [smem:[#allocation2]]
    %s25 = sld [smem:[#allocation2 + $0x1]]
    %s26 = sld [smem:[#allocation2 + $0x2]]
    %s27 = sld [smem:[#allocation2 + $0x3]]
    %s28 = sld [smem:[#allocation2 + $0x4]]
    %s29 = sld [smem:[#allocation2 + $0x5]]
    %s30 = sld [smem:[#allocation2 + $0x6]]
    %s31 = sld [smem:[#allocation2 + $0x7]]
    %s32 = sld [smem:[#allocation2 + $0x8]]
    %s33 = sld [smem:[#allocation2 + $0x9]]
    %s34 = sld [smem:[#allocation2 + $0xa]]
    %s35 = sld [smem:[#allocation2 + $0xb]]
    %s36 = sld [smem:[#allocation2 + $0xc]]
    %s37 = sld [smem:[#allocation2 + $0xd]]
    %s38 = sld [smem:[#allocation2 + $0xe]]
    %s39 = sld [smem:[#allocation2 + $0xf]]
    %s40 = sld [smem:[#allocation2 + $0x10]]
    %s41 = sld [smem:[#allocation2 + $0x11]]
    %s42 = sld [smem:[#allocation2 + $0x12]]
    %s43 = sld [smem:[#allocation2 + $0x13]]
    %s44 = sld [smem:[#allocation2 + $0x14]]
    %s45 = sld [smem:[#allocation2 + $0x15]]
    %s46 = sld [smem:[#allocation2 + $0x16]]
    %s47 = sld [smem:[#allocation2 + $0x17]]
    %s48 = sld [smem:[#allocation2 + $0x18]]
    %s49 = sld [smem:[#allocation2 + $0x19]]
    %s50 = sld [smem:[#allocation2 + $0x1a]]
    %s51 = sld [smem:[#allocation2 + $0x1b]]
    %s52 = sld [smem:[#allocation2 + $0x1c]]
    %s53 = sld [smem:[#allocation2 + $0x1d]]
    %s54 = sld [smem:[#allocation2 + $0x1e]]
    %s55 = sld [smem:[#allocation2 + $0x1f]]
    %s56 = sld [smem:[#allocation2 + $0x20]]
    %s57 = sld [smem:[#allocation2 + $0x21]]
    %s58 = sld [smem:[#allocation2 + $0x22]]
    %s59 = sld [smem:[#allocation2 + $0x23]]
    %s60 = sld [smem:[#allocation2 + $0x24]]
    %s61 = sld [smem:[#allocation2 + $0x25]]
    %s62 = sld [smem:[#allocation2 + $0x26]]
    %s63 = sld [smem:[#allocation2 + $0x27]]
    %s64 = sld [smem:[#allocation2 + $0x28]]
    %v65 = vld [vmem:[%s1] sm:$0xff]
    %s66 = scalar_lea.vmem %s1, 8
    %v67 = vld [vmem:[%s66] sm:$0xff]
    %s68 = scalar_lea.vmem %s1, 16
    %v69 = vld [vmem:[%s68] sm:$0xff]
    %s70 = scalar_lea.vmem %s1, 24
    %v71 = vld [vmem:[%s70] sm:$0xff]
    %s72 = scalar_lea.vmem %s1, 32
    %v73 = vld [vmem:[%s72] sm:$0xff]
    %s74 = scalar_lea.vmem %s1, 40
    %v75 = vld [vmem:[%s74] sm:$0xff]
    %v76 = vstv %s24
    %v77 = vmul.f32 %v65, %v76
    %v78 = vstv %s25
    %v79 = vmul.f32 %v67, %v78
    %v80 = vadd.f32 %v77, %v79
    %v81 = vstv %s26
    %v82 = vmul.f32 %v69, %v81
    %v83 = vadd.f32 %v80, %v82
    %v84 = vstv %s27
    %v85 = vmul.f32 %v71, %v84
    %v86 = vadd.f32 %v83, %v85
    %v87 = vstv %s28
    %v88 = vmul.f32 %v73, %v87
    %v89 = vadd.f32 %v86, %v88
    %v90 = vstv %s29
    %v91 = vmul.f32 %v75, %v90
    %v92 = vadd.f32 %v89, %v91
    %v93 = vstv %s48
    %v94 = vadd.f32 %v92, %v93
    %v95 = vtanh.pop %v94
    %v96 = vstv %s30
    %v97 = vmul.f32 %v65, %v96
    %v98 = vstv %s31
    %v99 = vmul.f32 %v67, %v98
    %v100 = vadd.f32 %v97, %v99
    %v101 = vstv %s32
    %v102 = vmul.f32 %v69, %v101
    %v103 = vadd.f32 %v100, %v102
    %v104 = vstv %s33
    %v105 = vmul.f32 %v71, %v104
    %v106 = vadd.f32 %v103, %v105
    %v107 = vstv %s34
    %v108 = vmul.f32 %v73, %v107
    %v109 = vadd.f32 %v106, %v108
    %v110 = vstv %s35
    %v111 = vmul.f32 %v75, %v110
    %v112 = vadd.f32 %v109, %v111
    %v113 = vstv %s49
    %v114 = vadd.f32 %v112, %v113
    %v115 = vtanh.pop %v114
    %v116 = vstv %s36
    %v117 = vmul.f32 %v65, %v116
    %v118 = vstv %s37
    %v119 = vmul.f32 %v67, %v118
    %v120 = vadd.f32 %v117, %v119
    %v121 = vstv %s38
    %v122 = vmul.f32 %v69, %v121
    %v123 = vadd.f32 %v120, %v122
    %v124 = vstv %s39
    %v125 = vmul.f32 %v71, %v124
    %v126 = vadd.f32 %v123, %v125
    %v127 = vstv %s40
    %v128 = vmul.f32 %v73, %v127
    %v129 = vadd.f32 %v126, %v128
    %v130 = vstv %s41
    %v131 = vmul.f32 %v75, %v130
    %v132 = vadd.f32 %v129, %v131
    %v133 = vstv %s50
    %v134 = vadd.f32 %v132, %v133
    %v135 = vtanh.pop %v134
    %v136 = vstv %s42
    %v137 = vmul.f32 %v65, %v136
    %v138 = vstv %s43
    %v139 = vmul.f32 %v67, %v138
    %v140 = vadd.f32 %v137, %v139
    %v141 = vstv %s44
    %v142 = vmul.f32 %v69, %v141
    %v143 = vadd.f32 %v140, %v142
    %v144 = vstv %s45
    %v145 = vmul.f32 %v71, %v144
    %v146 = vadd.f32 %v143, %v145
    %v147 = vstv %s46
    %v148 = vmul.f32 %v73, %v147
    %v149 = vadd.f32 %v146, %v148
    %v150 = vstv %s47
    %v151 = vmul.f32 %v75, %v150
    %v152 = vadd.f32 %v149, %v151
    %v153 = vstv %s51
    %v154 = vadd.f32 %v152, %v153
    %v155 = vtanh.pop %v154
    %v156 = vstv %s52
    %v157 = vmul.f32 %v95, %v156
    %v158 = vstv %s53
    %v159 = vmul.f32 %v115, %v158
    %v160 = vadd.f32 %v157, %v159
    %v161 = vstv %s54
    %v162 = vmul.f32 %v135, %v161
    %v163 = vadd.f32 %v160, %v162
    %v164 = vstv %s55
    %v165 = vmul.f32 %v155, %v164
    %v166 = vadd.f32 %v163, %v165
    %v167 = vstv %s60
    %v168 = vadd.f32 %v166, %v167
    %v169 = vtanh.pop %v168
    %v170 = vstv %s56
    %v171 = vmul.f32 %v95, %v170
    %v172 = vstv %s57
    %v173 = vmul.f32 %v115, %v172
    %v174 = vadd.f32 %v171, %v173
    %v175 = vstv %s58
    %v176 = vmul.f32 %v135, %v175
    %v177 = vadd.f32 %v174, %v176
    %v178 = vstv %s59
    %v179 = vmul.f32 %v155, %v178
    %v180 = vadd.f32 %v177, %v179
    %v181 = vstv %s61
    %v182 = vadd.f32 %v180, %v181
    %v183 = vtanh.pop %v182
    %v184 = vstv %s62
    %v185 = vmul.f32 %v169, %v184
    %v186 = vstv %s63
    %v187 = vmul.f32 %v183, %v186
    %v188 = vadd.f32 %v185, %v187
    %v189 = vstv %s64
    %v190 = vadd.f32 %v188, %v189
    %v191 = vtanh.pop %v190
    %v192 = vmul.f32 %v191, 0.5
    %v193 = vadd.f32 %v192, 0.5
    %194 = vst [vmem:[%s2] sm:$0xff] %v193
    // Predicated region
    $region14: #{titanic_net.1} parent=1 // pred_check
      _
    $region15: #{titanic_net.1} parent=1 // pred_check_branch
      %196 = sbr.rel (0) target = $region17
    $region16: #{titanic_net.1} parent=1 // pred_region
      _
    $region17: #{titanic_net.1} parent=1 // pred_fallthru
      _
    // Predicated region
    $region18: #{titanic_net.1} parent=1 // pred_check
      _
    $region19: #{titanic_net.1} parent=1 // pred_check_branch
      %198 = sbr.rel (0) target = $region21
    $region20: #{titanic_net.1} parent=1 // pred_region
      _
    $region21: #{titanic_net.1} parent=1 // pred_fallthru
      _
    %199 = vsyncpa [#allocation3], 1

</llo_original>
